<compile_context>
chip_gen: v7x
topology: tpu7x:2x2x1
jax: 0.10.0
libtpu: 0.0.40
codegen_flags: <defaults>
</compile_context>

<pallas_src>
import functools
import math

import jax
import jax.numpy as jnp
import numpy as np
from jax import lax
from jax.experimental import pallas as pl
from jax.experimental.pallas import tpu as pltpu


def _round_up(x, m):
    return (x + m - 1) // m * m


# ------------------------------------------------------------------ kernels --

def _pair_block(xi_ref, xj_ref, sqi_ref, sqj_ref, li_ref, lj_ref,
                ri_ref, cj_ref, batch):
    """Squared distances plus (strict-upper & valid) / same-label masks for the
    current (row-block, col-block) pair tile."""
    # Gram matrix on the MXU, contracting over hidden (native dtype in,
    # f32 accumulation out).
    g = lax.dot_general(xi_ref[...], xj_ref[...], (((1,), (1,)), ((), ())),
                        preferred_element_type=jnp.float32)            # (tm, tn)
    # ||xi - xj||^2 from precomputed row norms (clamped: the Gram form can go
    # slightly negative from cancellation).
    d2 = jnp.maximum(sqi_ref[...] + sqj_ref[...] - 2.0 * g, 0.0)
    rid = ri_ref[...]                        # (tm, 1) global row indices
    cid = cj_ref[...]                        # (1, tn) global col indices
    # Strict upper triangle of the global BxB matrix, un-padded entries only
    # (col < batch together with col > row implies row < batch).
    upper = jnp.logical_and(cid > rid, cid < batch)
    same = jnp.logical_and(upper, li_ref[...] == lj_ref[...])
    return d2, upper, same


def _fermibose_kernel(bi_ref, bj_ref, xi_ref, xj_ref, sqi_ref, sqj_ref,
                      li_ref, lj_ref, ri_ref, cj_ref, out_ref,
                      *, d_f, beta, batch, inv_hidden):
    del bi_ref, bj_ref                       # consumed by the index_maps only
    d2, _, same = _pair_block(xi_ref, xj_ref, sqi_ref, sqj_ref,
                              li_ref, lj_ref, ri_ref, cj_ref, batch)
    D = d2 * inv_hidden
    thr = d_f / beta
    # relu(D - thr) * L values and nonzero counts with fused compare/select;
    # L is {0,1} for hard labels so "nonzero" == "same label and D > thr".
    mask_b = jnp.logical_and(same, D > thr)
    mask_f = jnp.logical_and(same, D < d_f)
    bose = jnp.where(mask_b, D - thr, 0.0)
    fermi = jnp.where(mask_f, d_f - D, 0.0)
    z = jnp.zeros((1, d2.shape[1]), jnp.float32)
    # Sublane-only partial reduction; the cross-lane reduce is deferred to the
    # wrapper epilogue.  Rows: [bose_sum, bose_cnt, fermi_sum, fermi_cnt, 0...].
    out_ref[0] = jnp.concatenate(
        [jnp.sum(bose, axis=0, keepdims=True),
         jnp.sum(mask_b.astype(jnp.float32), axis=0, keepdims=True),
         jnp.sum(fermi, axis=0, keepdims=True),
         jnp.sum(mask_f.astype(jnp.float32), axis=0, keepdims=True),
         z, z, z, z], axis=0)


def _stronginter_kernel(bi_ref, bj_ref, xi_ref, xj_ref, sqi_ref, sqj_ref,
                        li_ref, lj_ref, ri_ref, cj_ref, out_ref,
                        *, a, b, batch):
    del bi_ref, bj_ref
    d2, upper, same = _pair_block(xi_ref, xj_ref, sqi_ref, sqj_ref,
                                  li_ref, lj_ref, ri_ref, cj_ref, batch)
    dn = jnp.sqrt(d2)
    # Exact divide (approximate reciprocal precision was flagged in review).
    phi = a / (dn + 1e-05) + b * dn - math.sqrt(a * b)
    phi_same = jnp.where(same, phi, 0.0)     # triu(L, 1) * phi
    phi_all = jnp.where(upper, phi, 0.0)     # triu(1, 1) * phi
    z = jnp.zeros((1, d2.shape[1]), jnp.float32)
    # Rows: [same_pair_count, sum(phi on same), sum(phi on all upper), 0...].
    out_ref[0] = jnp.concatenate(
        [jnp.sum(same.astype(jnp.float32), axis=0, keepdims=True),
         jnp.sum(phi_same, axis=0, keepdims=True),
         jnp.sum(phi_all, axis=0, keepdims=True),
         z, z, z, z, z], axis=0)


# ------------------------------------------------------------------ wrapper --

def _vmem_capacity_bytes():
    try:
        return int(pltpu.get_tpu_info().vmem_capacity_bytes)
    except Exception:
        return 64 * 1024 * 1024              # conservative (v7x-sized) fallback


def _pick_tile(hidden, itemsize, vmem_cap):
    """Largest pair tile whose double-buffered x blocks plus f32 (tile,tile)
    temporaries fit comfortably (v5e/v6e 128 MiB -> 512/1024; v7x 64 MiB)."""
    budget = int(vmem_cap * 0.6)
    for cand in (1024, 512, 256, 128):
        need = (4 * cand * hidden * itemsize   # 2 x inputs x 2 pipeline buffers
                + 8 * cand * cand * 4          # live f32 pair temporaries
                + (2 << 20))                   # small vectors / outputs / slack
        if need <= budget:
            return cand
    return 128


def fbm_loss(inputs, targets, weights=None, *, num_classes, lam, a, b=1.0,
             beta=50.0, if_onehot=False, losstype="fast_FermiBose",
             tile=None, vmem_limit_bytes=None, gram_in_bf16=False):
    """JAX/Pallas equivalent of FBMLoss.forward."""
    inputs = jnp.asarray(inputs)
    B, H = inputs.shape

    if if_onehot:
        # TODO(synk): assumes hard one-hot targets; soft label matrices
        # (labels @ labels.T with non-{0,1} entries) are not supported here.
        labels = jnp.argmax(jnp.asarray(targets), axis=-1).astype(jnp.int32)
    else:
        labels = jnp.asarray(targets).astype(jnp.int32)

    x = inputs
    mm_dtype = jnp.bfloat16 if (gram_in_bf16 and x.dtype == jnp.float32) else x.dtype
    mm_itemsize = jnp.dtype(mm_dtype).itemsize

    # ---- tile / VMEM budget derived from the device -------------------------
    vmem_cap = _vmem_capacity_bytes()
    if tile is None:
        tile = _pick_tile(H, mm_itemsize, vmem_cap)
    if B <= tile:
        pb = _round_up(max(B, 8), 8)
        tm = tn = pb                          # single pair tile, full-array blocks
    else:
        assert tile % 128 == 0, "pair tile must be a multiple of 128"
        pb = _round_up(B, tile)
        tm = tn = tile
    if vmem_limit_bytes is None:
        need = 4 * tm * H * mm_itemsize + 8 * tm * tn * 4
        vmem_limit_bytes = int(min(vmem_cap * 0.9,
                                   max(32 << 20, 2 * need + (4 << 20))))

    # ---- padding & per-row auxiliary vectors (one O(B*H) XLA pass) ----------
    pad = pb - B
    if pad:
        x = jnp.pad(x, ((0, pad), (0, 0)))
        labels = jnp.pad(labels, (0, pad))
    sq = jnp.sum(jnp.square(x.astype(jnp.float32)), axis=1)       # row norms
    ids = jnp.arange(pb, dtype=jnp.int32)
    x_mm = x.astype(mm_dtype)

    sqi, sqj = sq.reshape(pb, 1), sq.reshape(1, pb)
    li, lj = labels.reshape(pb, 1), labels.reshape(1, pb)
    ri, cj = ids.reshape(pb, 1), ids.reshape(1, pb)

    # ---- triangular block grid: only i <= j pair blocks ----------------------
    T = pb // tm
    bi = np.repeat(np.arange(T, dtype=np.int32), np.arange(T, 0, -1))
    bj = np.concatenate([np.arange(i, T, dtype=np.int32) for i in range(T)])
    n_blocks = int(bi.shape[0])               # T * (T + 1) // 2

    row_blk = lambda t, bi, bj: (bi[t], 0)    # x row block / (tm, 1) row vectors
    col_x = lambda t, bi, bj: (bj[t], 0)      # x col block
    col_vec = lambda t, bi, bj: (0, bj[t])    # (1, tn) col vectors

    if losstype == "fast_FermiBose":
        kernel = functools.partial(_fermibose_kernel, d_f=float(a),
                                   beta=float(beta), batch=B,
                                   inv_hidden=1.0 / float(H))
    elif losstype == "fast_StrongInter":
        kernel = functools.partial(_stronginter_kernel, a=float(a),
                                   b=float(b), batch=B)
    else:
        raise ValueError(losstype)

    partials = pl.pallas_call(
        kernel,
        out_shape=jax.ShapeDtypeStruct((n_blocks, 8, tn), jnp.float32),
        grid_spec=pltpu.PrefetchScalarGridSpec(
            num_scalar_prefetch=2,
            grid=(n_blocks,),
            in_specs=[
                pl.BlockSpec((tm, H), row_blk),     # x row block
                pl.BlockSpec((tn, H), col_x),       # x col block
                pl.BlockSpec((tm, 1), row_blk),     # row norms
                pl.BlockSpec((1, tn), col_vec),     # col norms
                pl.BlockSpec((tm, 1), row_blk),     # row labels
                pl.BlockSpec((1, tn), col_vec),     # col labels
                pl.BlockSpec((tm, 1), row_blk),     # global row indices
                pl.BlockSpec((1, tn), col_vec),     # global col indices
            ],
            out_specs=pl.BlockSpec((1, 8, tn), lambda t, bi, bj: (t, 0, 0)),
        ),
        compiler_params=pltpu.CompilerParams(
            # Each step owns a disjoint output block -> the triangular axis is
            # parallel (v7x megacore splits it across both TensorCores).
            dimension_semantics=("parallel",),
            vmem_limit_bytes=int(vmem_limit_bytes),
        ),
    )(jnp.asarray(bi), jnp.asarray(bj),
      x_mm, x_mm, sqi, sqj, li, lj, ri, cj)

    # ---- tiny epilogue in plain XLA (cross-lane reduce + scalar loss math) ---
    sums = jnp.sum(partials, axis=(0, 2))            # (8,)

    if losstype == "fast_FermiBose":
        d_f, alpha = float(a), float(b)
        # Full-matrix count_nonzero recovered by symmetry: off-diagonal count is
        # 2x the strict-upper count; the diagonal (D=0, L=1) is a static
        # function of the hyper-parameters.
        diag_bose = float(B) if (d_f / float(beta)) < 0.0 else 0.0
        diag_fermi = float(B) if d_f > 0.0 else 0.0
        num_boson = 2.0 * sums[1] + diag_bose
        num_fermi = 2.0 * sums[3] + diag_fermi
        # Faithful to the reference: no floor on the counts (empty -> inf/nan).
        loss = sums[0] / num_boson + alpha * (sums[2] / num_fermi)
    else:
        same_cnt = jnp.maximum(sums[0], 1.0)
        diff_cnt = jnp.maximum(B * (B - 1) / 2.0 - same_cnt, 1.0)
        loss = sums[1] / same_cnt + (sums[1] - sums[2]) / diff_cnt

    if weights is not None:
        w = jnp.asarray(weights).astype(jnp.float32)
        loss = loss + 0.5 * lam / num_classes * jnp.sum(w * w)
    return loss


# ---------------------------------------------------------------- reference --

def _fbm_loss_ref(inputs, targets_onehot, weights, *, num_classes, lam, a, b,
                  beta, losstype):
    x = inputs.astype(jnp.float32)
    y = targets_onehot.astype(jnp.float32)
    B, H = x.shape
    diff = x[:, None, :] - x[None, :, :]
    triu = jnp.triu(jnp.ones((B, B), jnp.float32), k=1)
    if losstype == "fast_FermiBose":
        D = jnp.sum(diff ** 2, axis=2) / H
        L = y @ y.T
        diff_label = jax.nn.relu(a - D)
        same_label = jax.nn.relu(D - a / beta)
        bose = same_label * L
        bose_loss = jnp.sum(bose * triu) / jnp.sum(bose != 0)
        fermi = diff_label * L
        fermi_loss = jnp.sum(fermi * triu) / jnp.sum(fermi != 0)
        loss = bose_loss + b * fermi_loss
    else:
        Dn = jnp.linalg.norm(diff, axis=2)
        phi = a / (Dn + 1e-05) + b * Dn - math.sqrt(a * b)
        L = jnp.triu(y @ y.T, k=1)
        same_cnt = jnp.maximum(jnp.sum(L), 1.0)
        bose_loss = jnp.sum(jnp.triu(L * phi, k=1)) / same_cnt
        diff_cnt = jnp.maximum(B * (B - 1) / 2.0 - same_cnt, 1.0)
        fermi_loss = jnp.sum(jnp.triu((L - 1.0) * phi, k=1)) / diff_cnt
        loss = bose_loss + fermi_loss
    if weights is not None:
        loss = loss + 0.5 * lam / num_classes * jnp.sum(
            weights.astype(jnp.float32) ** 2)
    return loss


# --------------------------------------------------------------------- main --

if __name__ == "__main__":
    key = jax.random.PRNGKey(0)
    k1, k2, k3, k4 = jax.random.split(key, 4)

    lam, a, b, beta = 0.01, 4.0, 1.0, 50.0

    # --- small shape (single-tile path) --------------------------------------
    batch, hidden, num_classes = 8, 32, 4
    inputs = jax.random.normal(k1, (batch, hidden), dtype=jnp.float32)
    targets = jnp.array([0, 0, 1, 1, 2, 2, 3, 3], dtype=jnp.int32)
    weights = jax.random.normal(k2, (hidden, num_classes), dtype=jnp.float32)

    loss_fb = fbm_loss(inputs, targets, weights, num_classes=num_classes,
                       lam=lam, a=a, b=b, beta=beta, losstype="fast_FermiBose")
    loss_si = fbm_loss(inputs, targets, weights, num_classes=num_classes,
                       lam=lam, a=a, b=b, beta=beta, losstype="fast_StrongInter")
    jax.block_until_ready((loss_fb, loss_si))

    y1 = jax.nn.one_hot(targets, num_classes, dtype=jnp.float32)
    ref_fb = _fbm_loss_ref(inputs, y1, weights, num_classes=num_classes,
                           lam=lam, a=a, b=b, beta=beta,
                           losstype="fast_FermiBose")
    ref_si = _fbm_loss_ref(inputs, y1, weights, num_classes=num_classes,
                           lam=lam, a=a, b=b, beta=beta,
                           losstype="fast_StrongInter")
    assert jnp.allclose(loss_fb, ref_fb, rtol=2e-3, atol=1e-3), (loss_fb, ref_fb)
    assert jnp.allclose(loss_si, ref_si, rtol=2e-3, atol=1e-3), (loss_si, ref_si)

    # --- larger shape exercising the triangular multi-block (padded) path ----
    B2, H2, C2 = 200, 64, 10
    x2 = jax.random.normal(k3, (B2, H2), dtype=jnp.float32)
    t2 = jax.random.randint(k4, (B2,), 0, C2, dtype=jnp.int32)

    loss_fb2 = fbm_loss(x2, t2, None, num_classes=C2, lam=lam, a=a, b=b,
                        beta=beta, losstype="fast_FermiBose", tile=128)
    loss_si2 = fbm_loss(x2, t2, None, num_classes=C2, lam=lam, a=a, b=b,
                        beta=beta, losstype="fast_StrongInter", tile=128)
    jax.block_until_ready((loss_fb2, loss_si2))

    y2 = jax.nn.one_hot(t2, C2, dtype=jnp.float32)
    ref_fb2 = _fbm_loss_ref(x2, y2, None, num_classes=C2, lam=lam, a=a, b=b,
                            beta=beta, losstype="fast_FermiBose")
    ref_si2 = _fbm_loss_ref(x2, y2, None, num_classes=C2, lam=lam, a=a, b=b,
                            beta=beta, losstype="fast_StrongInter")
    assert jnp.allclose(loss_fb2, ref_fb2, rtol=2e-3, atol=1e-3), (loss_fb2, ref_fb2)
    assert jnp.allclose(loss_si2, ref_si2, rtol=2e-3, atol=1e-3), (loss_si2, ref_si2)

    print("KERNEL_OK")
</pallas_src>

<mosaic_0001>
module attributes {stable_mosaic.version = 11 : i64} {
  func.func @_fermibose_kernel(%arg0: i32, %arg1: memref<1xi32, #tpu.memory_space<smem>>, %arg2: memref<1xi32, #tpu.memory_space<smem>>, %arg3: memref<8x32xf32, #tpu.memory_space<vmem>>, %arg4: memref<8x32xf32, #tpu.memory_space<vmem>>, %arg5: memref<8x1xf32, #tpu.memory_space<vmem>>, %arg6: memref<1x8xf32, #tpu.memory_space<vmem>>, %arg7: memref<8x1xi32, #tpu.memory_space<vmem>>, %arg8: memref<1x8xi32, #tpu.memory_space<vmem>>, %arg9: memref<8x1xi32, #tpu.memory_space<vmem>>, %arg10: memref<1x8xi32, #tpu.memory_space<vmem>>, %arg11: memref<1x8x8xf32, #tpu.memory_space<vmem>>) attributes {dimension_semantics = [#tpu.dimension_semantics<parallel>], iteration_bounds = array<i64: 1>, scalar_prefetch = 2 : i64, scratch_operands = 0 : i64, tpu.core_type = #tpu.core_type<tc>, window_params = [{transform_indices = @transform_0, window_bounds = array<i64: 8, 32>}, {transform_indices = @transform_1, window_bounds = array<i64: 8, 32>}, {transform_indices = @transform_2, window_bounds = array<i64: 8, 1>}, {transform_indices = @transform_3, window_bounds = array<i64: 1, 8>}, {transform_indices = @transform_4, window_bounds = array<i64: 8, 1>}, {transform_indices = @transform_5, window_bounds = array<i64: 1, 8>}, {transform_indices = @transform_6, window_bounds = array<i64: 8, 1>}, {transform_indices = @transform_7, window_bounds = array<i64: 1, 8>}, {transform_indices = @transform_8, window_bounds = array<i64: 1, 8, 8>}]} {
    %c0 = arith.constant 0 : index
    %c0_0 = arith.constant 0 : index
    %0 = vector.load %arg3[%c0, %c0_0] : memref<8x32xf32, #tpu.memory_space<vmem>>, vector<8x32xf32>
    %c0_1 = arith.constant 0 : index
    %c0_2 = arith.constant 0 : index
    %1 = vector.load %arg4[%c0_1, %c0_2] : memref<8x32xf32, #tpu.memory_space<vmem>>, vector<8x32xf32>
    %cst = arith.constant dense<0.000000e+00> : vector<8x8xf32>
    %2 = tpu.matmul %0, %1, %cst {dimension_numbers = #tpu.dot_dimension_numbers<[1], [1], [0], [0], [0, 0, 1, 0], [], []>} : vector<8x32xf32>, vector<8x32xf32>, vector<8x8xf32> -> vector<8x8xf32>
    %c0_3 = arith.constant 0 : index
    %c0_4 = arith.constant 0 : index
    %3 = vector.load %arg5[%c0_3, %c0_4] : memref<8x1xf32, #tpu.memory_space<vmem>>, vector<8x1xf32>
    %c0_5 = arith.constant 0 : index
    %c0_6 = arith.constant 0 : index
    %4 = vector.load %arg6[%c0_5, %c0_6] : memref<1x8xf32, #tpu.memory_space<vmem>>, vector<1x8xf32>
    %5 = vector.broadcast %3 : vector<8x1xf32> to vector<8x8xf32>
    %6 = vector.broadcast %4 : vector<1x8xf32> to vector<8x8xf32>
    %7 = arith.addf %5, %6 : vector<8x8xf32>
    %cst_7 = arith.constant 2.000000e+00 : f32
    %8 = vector.broadcast %cst_7 : f32 to vector<8x8xf32>
    %9 = arith.mulf %8, %2 : vector<8x8xf32>
    %10 = arith.subf %7, %9 : vector<8x8xf32>
    %cst_8 = arith.constant 0.000000e+00 : f32
    %11 = vector.broadcast %cst_8 : f32 to vector<8x8xf32>
    %12 = arith.maximumf %10, %11 : vector<8x8xf32>
    %c0_9 = arith.constant 0 : index
    %c0_10 = arith.constant 0 : index
    %13 = vector.load %arg9[%c0_9, %c0_10] : memref<8x1xi32, #tpu.memory_space<vmem>>, vector<8x1xi32>
    %c0_11 = arith.constant 0 : index
    %c0_12 = arith.constant 0 : index
    %14 = vector.load %arg10[%c0_11, %c0_12] : memref<1x8xi32, #tpu.memory_space<vmem>>, vector<1x8xi32>
    %15 = vector.broadcast %14 : vector<1x8xi32> to vector<8x8xi32>
    %16 = vector.broadcast %13 : vector<8x1xi32> to vector<8x8xi32>
    %17 = arith.cmpi sgt, %15, %16 : vector<8x8xi32>
    %c8_i32 = arith.constant 8 : i32
    %18 = vector.broadcast %c8_i32 : i32 to vector<1x8xi32>
    %19 = arith.cmpi slt, %14, %18 : vector<1x8xi32>
    %20 = vector.broadcast %19 : vector<1x8xi1> to vector<8x8xi1>
    %21 = arith.andi %17, %20 : vector<8x8xi1>
    %c0_13 = arith.constant 0 : index
    %c0_14 = arith.constant 0 : index
    %22 = vector.load %arg7[%c0_13, %c0_14] : memref<8x1xi32, #tpu.memory_space<vmem>>, vector<8x1xi32>
    %c0_15 = arith.constant 0 : index
    %c0_16 = arith.constant 0 : index
    %23 = vector.load %arg8[%c0_15, %c0_16] : memref<1x8xi32, #tpu.memory_space<vmem>>, vector<1x8xi32>
    %24 = vector.broadcast %22 : vector<8x1xi32> to vector<8x8xi32>
    %25 = vector.broadcast %23 : vector<1x8xi32> to vector<8x8xi32>
    %26 = arith.cmpi eq, %24, %25 : vector<8x8xi32>
    %27 = arith.andi %21, %26 : vector<8x8xi1>
    %cst_17 = arith.constant 3.125000e-02 : f32
    %28 = vector.broadcast %cst_17 : f32 to vector<8x8xf32>
    %29 = arith.mulf %12, %28 : vector<8x8xf32>
    %cst_18 = arith.constant 8.000000e-02 : f32
    %30 = vector.broadcast %cst_18 : f32 to vector<8x8xf32>
    %31 = arith.cmpf ogt, %29, %30 : vector<8x8xf32>
    %32 = arith.andi %27, %31 : vector<8x8xi1>
    %cst_19 = arith.constant 4.000000e+00 : f32
    %33 = vector.broadcast %cst_19 : f32 to vector<8x8xf32>
    %34 = arith.cmpf olt, %29, %33 : vector<8x8xf32>
    %35 = arith.andi %27, %34 : vector<8x8xi1>
    %cst_20 = arith.constant 8.000000e-02 : f32
    %36 = vector.broadcast %cst_20 : f32 to vector<8x8xf32>
    %37 = arith.subf %29, %36 : vector<8x8xf32>
    %cst_21 = arith.constant 0.000000e+00 : f32
    %38 = vector.broadcast %cst_21 : f32 to vector<8x8xf32>
    %39 = arith.select %32, %37, %38 : vector<8x8xi1>, vector<8x8xf32>
    %cst_22 = arith.constant 4.000000e+00 : f32
    %40 = vector.broadcast %cst_22 : f32 to vector<8x8xf32>
    %41 = arith.subf %40, %29 : vector<8x8xf32>
    %cst_23 = arith.constant 0.000000e+00 : f32
    %42 = vector.broadcast %cst_23 : f32 to vector<8x8xf32>
    %43 = arith.select %35, %41, %42 : vector<8x8xi1>, vector<8x8xf32>
    %cst_24 = arith.constant 0.000000e+00 : f32
    %44 = vector.broadcast %cst_24 : f32 to vector<1x8xf32>
    %cst_25 = arith.constant dense<0.000000e+00> : vector<8xf32>
    %45 = vector.multi_reduction <add>, %39, %cst_25 [0] : vector<8x8xf32> to vector<8xf32>
    %46 = vector.shape_cast %45 : vector<8xf32> to vector<1x8xf32>
    %47 = arith.extui %32 : vector<8x8xi1> to vector<8x8xi32>
    %48 = arith.sitofp %47 : vector<8x8xi32> to vector<8x8xf32>
    %cst_26 = arith.constant dense<0.000000e+00> : vector<8xf32>
    %49 = vector.multi_reduction <add>, %48, %cst_26 [0] : vector<8x8xf32> to vector<8xf32>
    %50 = vector.shape_cast %49 : vector<8xf32> to vector<1x8xf32>
    %cst_27 = arith.constant dense<0.000000e+00> : vector<8xf32>
    %51 = vector.multi_reduction <add>, %43, %cst_27 [0] : vector<8x8xf32> to vector<8xf32>
    %52 = vector.shape_cast %51 : vector<8xf32> to vector<1x8xf32>
    %53 = arith.extui %35 : vector<8x8xi1> to vector<8x8xi32>
    %54 = arith.sitofp %53 : vector<8x8xi32> to vector<8x8xf32>
    %cst_28 = arith.constant dense<0.000000e+00> : vector<8xf32>
    %55 = vector.multi_reduction <add>, %54, %cst_28 [0] : vector<8x8xf32> to vector<8xf32>
    %56 = vector.shape_cast %55 : vector<8xf32> to vector<1x8xf32>
    %57 = tpu.concatenate %46, %50, %52, %56, %44, %44, %44, %44 in 0 : vector<1x8xf32>, vector<1x8xf32>, vector<1x8xf32>, vector<1x8xf32>, vector<1x8xf32>, vector<1x8xf32>, vector<1x8xf32>, vector<1x8xf32> -> vector<8x8xf32>
    %c0_29 = arith.constant 0 : index
    %c0_30 = arith.constant 0 : index
    %c0_31 = arith.constant 0 : index
    %58 = vector.load %arg11[%c0_29, %c0_30, %c0_31] : memref<1x8x8xf32, #tpu.memory_space<vmem>>, vector<1x8x8xf32>
    %59 = vector.shape_cast %58 : vector<1x8x8xf32> to vector<8x8xf32>
    %60 = vector.shape_cast %57 : vector<8x8xf32> to vector<1x8x8xf32>
    tpu.vector_store %arg11[%c0_29, %c0_30, %c0_31], %60 {strides = array<i32>} : memref<1x8x8xf32, #tpu.memory_space<vmem>>, vector<1x8x8xf32>,
    return
  }
  func.func @transform_0(%arg0: i32, %arg1: memref<1xi32, #tpu.memory_space<smem>>, %arg2: memref<1xi32, #tpu.memory_space<smem>>) -> (i32, i32) {
    %0 = arith.index_cast %arg0 : i32 to index
    %1 = memref.load %arg1[%0] : memref<1xi32, #tpu.memory_space<smem>>
    %c0_i32 = arith.constant 0 : i32
    %c0_i32_0 = arith.constant 0 : i32
    return %1, %c0_i32 : i32, i32
  }
  func.func @transform_1(%arg0: i32, %arg1: memref<1xi32, #tpu.memory_space<smem>>, %arg2: memref<1xi32, #tpu.memory_space<smem>>) -> (i32, i32) {
    %0 = arith.index_cast %arg0 : i32 to index
    %1 = memref.load %arg2[%0] : memref<1xi32, #tpu.memory_space<smem>>
    %c0_i32 = arith.constant 0 : i32
    %c0_i32_0 = arith.constant 0 : i32
    return %1, %c0_i32 : i32, i32
  }
  func.func @transform_2(%arg0: i32, %arg1: memref<1xi32, #tpu.memory_space<smem>>, %arg2: memref<1xi32, #tpu.memory_space<smem>>) -> (i32, i32) {
    %0 = arith.index_cast %arg0 : i32 to index
    %1 = memref.load %arg1[%0] : memref<1xi32, #tpu.memory_space<smem>>
    %c0_i32 = arith.constant 0 : i32
    %c0_i32_0 = arith.constant 0 : i32
    return %1, %c0_i32 : i32, i32
  }
  func.func @transform_3(%arg0: i32, %arg1: memref<1xi32, #tpu.memory_space<smem>>, %arg2: memref<1xi32, #tpu.memory_space<smem>>) -> (i32, i32) {
    %0 = arith.index_cast %arg0 : i32 to index
    %1 = memref.load %arg2[%0] : memref<1xi32, #tpu.memory_space<smem>>
    %c0_i32 = arith.constant 0 : i32
    %c0_i32_0 = arith.constant 0 : i32
    return %c0_i32, %1 : i32, i32
  }
  func.func @transform_4(%arg0: i32, %arg1: memref<1xi32, #tpu.memory_space<smem>>, %arg2: memref<1xi32, #tpu.memory_space<smem>>) -> (i32, i32) {
    %0 = arith.index_cast %arg0 : i32 to index
    %1 = memref.load %arg1[%0] : memref<1xi32, #tpu.memory_space<smem>>
    %c0_i32 = arith.constant 0 : i32
    %c0_i32_0 = arith.constant 0 : i32
    return %1, %c0_i32 : i32, i32
  }
  func.func @transform_5(%arg0: i32, %arg1: memref<1xi32, #tpu.memory_space<smem>>, %arg2: memref<1xi32, #tpu.memory_space<smem>>) -> (i32, i32) {
    %0 = arith.index_cast %arg0 : i32 to index
    %1 = memref.load %arg2[%0] : memref<1xi32, #tpu.memory_space<smem>>
    %c0_i32 = arith.constant 0 : i32
    %c0_i32_0 = arith.constant 0 : i32
    return %c0_i32, %1 : i32, i32
  }
  func.func @transform_6(%arg0: i32, %arg1: memref<1xi32, #tpu.memory_space<smem>>, %arg2: memref<1xi32, #tpu.memory_space<smem>>) -> (i32, i32) {
    %0 = arith.index_cast %arg0 : i32 to index
    %1 = memref.load %arg1[%0] : memref<1xi32, #tpu.memory_space<smem>>
    %c0_i32 = arith.constant 0 : i32
    %c0_i32_0 = arith.constant 0 : i32
    return %1, %c0_i32 : i32, i32
  }
  func.func @transform_7(%arg0: i32, %arg1: memref<1xi32, #tpu.memory_space<smem>>, %arg2: memref<1xi32, #tpu.memory_space<smem>>) -> (i32, i32) {
    %0 = arith.index_cast %arg0 : i32 to index
    %1 = memref.load %arg2[%0] : memref<1xi32, #tpu.memory_space<smem>>
    %c0_i32 = arith.constant 0 : i32
    %c0_i32_0 = arith.constant 0 : i32
    return %c0_i32, %1 : i32, i32
  }
  func.func @transform_8(%arg0: i32, %arg1: memref<1xi32, #tpu.memory_space<smem>>, %arg2: memref<1xi32, #tpu.memory_space<smem>>) -> (i32, i32, i32) {
    %c0_i32 = arith.constant 0 : i32
    %c0_i32_0 = arith.constant 0 : i32
    %c0_i32_1 = arith.constant 0 : i32
    return %arg0, %c0_i32, %c0_i32_0 : i32, i32, i32
  }
}

</mosaic_0001>

<llo_original>
// kernel: tpu_custom_call.1
$region0: #{tpu_custom_call.1}
  #allocation0 [shape = 'u32[]', space=smem, size = 0x4, offset = 0x4, fixed_abs, tag = 'smem constant byte address 0x4 - core index']
  #allocation1 [shape = 'u32[144,128]{1,0:T(1,128)}', space=vmem, size = 0x12000, scoped, tag = 'internal scratch']
  #allocation2 [shape = 's32[1]{0}', space=sflag, size = 0x4, scoped, tag = 'scoped memory for tpu_custom_call.1']
  #allocation3 [shape = 's32[1]{0:T(128)S(6)}', space=smem, size = 0x200, scoped, tag = 'prefetched SMEM operand 0']
  #allocation4 [shape = 's32[1]{0:T(128)S(6)}', space=smem, size = 0x200, scoped, tag = 'prefetched SMEM operand 1']
  %s0 = inlined_call_operand.<no memory space> [shape: s32[1], index: 0, kind: input, shape index: {}]
  %s1 = inlined_call_operand.<no memory space> [shape: s32[1], index: 1, kind: input, shape index: {}]
  %s2 = inlined_call_operand.vmem [shape: f32[8,32], index: 2, kind: input, shape index: {}]
  %s3 = inlined_call_operand.vmem [shape: f32[8,32], index: 3, kind: input, shape index: {}]
  %s4 = inlined_call_operand.vmem [shape: f32[8,1], index: 4, kind: input, shape index: {}]
  %s5 = inlined_call_operand.vmem [shape: f32[1,8], index: 5, kind: input, shape index: {}]
  %s6 = inlined_call_operand.vmem [shape: s32[8,1], index: 6, kind: input, shape index: {}]
  %s7 = inlined_call_operand.vmem [shape: s32[1,8], index: 7, kind: input, shape index: {}]
  %s8 = inlined_call_operand.vmem [shape: s32[8,1], index: 8, kind: input, shape index: {}]
  %s9 = inlined_call_operand.vmem [shape: s32[1,8], index: 9, kind: input, shape index: {}]
  %s10 = inlined_call_operand.hbm [shape: f32[1,8,8], index: 10, kind: output, shape index: {}]
  %s11 = sld [smem:[#allocation0]]
  $region42: #{tpu_custom_call.1} parent=0
    _
  %s13 = ssub.s32 1, %s11
  %s14 = scalar_select 0, %s13, %s11
  %15 = sst [smem:[#allocation3]] %s0
  %16 = sst [smem:[#allocation4]] %s1
  $region1: #{tpu_custom_call.1} parent=0
    #allocation5 [shape = 'u8[4096]{0}', space=vmem, size = 0x1000, scoped, tag = 'output window, operand 0, single buffered']
    #allocation6 [shape = 's32[1]{0}', space=sflag, size = 0x4, scoped, tag = 'scoped memory for tpu_custom_call.1']
    %17 = vsyncpa [#allocation6], 0
    // Predicated region
    $region2: #{tpu_custom_call.1} parent=1 // pred_check
      _
    $region3: #{tpu_custom_call.1} parent=1 // pred_check_branch
      %19 = sbr.rel (0) target = $region5
    $region4: #{tpu_custom_call.1} parent=1 // pred_region
      %s20 = sld [smem:[#allocation3]]
      %p21 = scmp.lt.s32.totalorder %s20, 0
      %s22 = scalar_select %p21, %s20, 0
      %s23 = smul.addr %s22, 8
      %s24 = scalar_lea.vmem %s2, %s23
      %s25 = sld [smem:[#allocation3]]
    $region5: #{tpu_custom_call.1} parent=1 // pred_fallthru
      _
    // Predicated region
    $region6: #{tpu_custom_call.1} parent=1 // pred_check
      _
    $region7: #{tpu_custom_call.1} parent=1 // pred_check_branch
      %27 = sbr.rel (0) target = $region9
    $region8: #{tpu_custom_call.1} parent=1 // pred_region
      %s28 = sld [smem:[#allocation4]]
      %p29 = scmp.lt.s32.totalorder %s28, 0
      %s30 = scalar_select %p29, %s28, 0
      %s31 = smul.addr %s30, 8
      %s32 = scalar_lea.vmem %s3, %s31
      %s33 = sld [smem:[#allocation4]]
    $region9: #{tpu_custom_call.1} parent=1 // pred_fallthru
      _
    // Predicated region
    $region10: #{tpu_custom_call.1} parent=1 // pred_check
      _
    $region11: #{tpu_custom_call.1} parent=1 // pred_check_branch
      %35 = sbr.rel (0) target = $region13
    $region12: #{tpu_custom_call.1} parent=1 // pred_region
      %s36 = sld [smem:[#allocation3]]
      %p37 = scmp.lt.s32.totalorder %s36, 0
      %s38 = scalar_select %p37, %s36, 0
      %s39 = smul.addr %s38, 8
      %s40 = scalar_lea.vmem %s4, %s39
      %s41 = sld [smem:[#allocation3]]
    $region13: #{tpu_custom_call.1} parent=1 // pred_fallthru
      _
    // Predicated region
    $region14: #{tpu_custom_call.1} parent=1 // pred_check
      _
    $region15: #{tpu_custom_call.1} parent=1 // pred_check_branch
      %43 = sbr.rel (0) target = $region17
    $region16: #{tpu_custom_call.1} parent=1 // pred_region
      %s44 = sld [smem:[#allocation4]]
      %p45 = scmp.lt.s32.totalorder %s44, 0
      %s46 = scalar_select %p45, %s44, 0
      %s47 = scalar_lea.vmem %s5, %s46
      %s48 = sld [smem:[#allocation4]]
    $region17: #{tpu_custom_call.1} parent=1 // pred_fallthru
      _
    // Predicated region
    $region18: #{tpu_custom_call.1} parent=1 // pred_check
      _
    $region19: #{tpu_custom_call.1} parent=1 // pred_check_branch
      %50 = sbr.rel (0) target = $region21
    $region20: #{tpu_custom_call.1} parent=1 // pred_region
      %s51 = sld [smem:[#allocation3]]
      %p52 = scmp.lt.s32.totalorder %s51, 0
      %s53 = scalar_select %p52, %s51, 0
      %s54 = smul.addr %s53, 8
      %s55 = scalar_lea.vmem %s6, %s54
      %s56 = sld [smem:[#allocation3]]
    $region21: #{tpu_custom_call.1} parent=1 // pred_fallthru
      _
    // Predicated region
    $region22: #{tpu_custom_call.1} parent=1 // pred_check
      _
    $region23: #{tpu_custom_call.1} parent=1 // pred_check_branch
      %58 = sbr.rel (0) target = $region25
    $region24: #{tpu_custom_call.1} parent=1 // pred_region
      %s59 = sld [smem:[#allocation4]]
      %p60 = scmp.lt.s32.totalorder %s59, 0
      %s61 = scalar_select %p60, %s59, 0
      %s62 = scalar_lea.vmem %s7, %s61
      %s63 = sld [smem:[#allocation4]]
    $region25: #{tpu_custom_call.1} parent=1 // pred_fallthru
      _
    // Predicated region
    $region26: #{tpu_custom_call.1} parent=1 // pred_check
      _
    $region27: #{tpu_custom_call.1} parent=1 // pred_check_branch
      %65 = sbr.rel (0) target = $region29
    $region28: #{tpu_custom_call.1} parent=1 // pred_region
      %s66 = sld [smem:[#allocation3]]
      %p67 = scmp.lt.s32.totalorder %s66, 0
      %s68 = scalar_select %p67, %s66, 0
      %s69 = smul.addr %s68, 8
      %s70 = scalar_lea.vmem %s8, %s69
      %s71 = sld [smem:[#allocation3]]
    $region29: #{tpu_custom_call.1} parent=1 // pred_fallthru
      _
    // Predicated region
    $region30: #{tpu_custom_call.1} parent=1 // pred_check
      _
    $region31: #{tpu_custom_call.1} parent=1 // pred_check_branch
      %73 = sbr.rel (0) target = $region33
    $region32: #{tpu_custom_call.1} parent=1 // pred_region
      %s74 = sld [smem:[#allocation4]]
      %p75 = scmp.lt.s32.totalorder %s74, 0
      %s76 = scalar_select %p75, %s74, 0
      %s77 = scalar_lea.vmem %s9, %s76
      %s78 = sld [smem:[#allocation4]]
    $region33: #{tpu_custom_call.1} parent=1 // pred_fallthru
      _
    %s79 = sld [smem:[#allocation3]]
    %p80 = scmp.lt.s32.totalorder %s79, 0
    %s81 = scalar_select %p80, %s79, 0
    %s82 = smul.addr %s81, 8
    %s83 = scalar_lea.vmem %s2, %s82
    %s84 = sld [smem:[#allocation4]]
    %p85 = scmp.lt.s32.totalorder %s84, 0
    %s86 = scalar_select %p85, %s84, 0
    %s87 = smul.addr %s86, 8
    %s88 = scalar_lea.vmem %s3, %s87
    %s89 = sld [smem:[#allocation3]]
    %p90 = scmp.lt.s32.totalorder %s89, 0
    %s91 = scalar_select %p90, %s89, 0
    %s92 = smul.addr %s91, 8
    %s93 = scalar_lea.vmem %s4, %s92
    %s94 = sld [smem:[#allocation4]]
    %p95 = scmp.lt.s32.totalorder %s94, 0
    %s96 = scalar_select %p95, %s94, 0
    %s97 = scalar_lea.vmem %s5, %s96
    %s98 = sld [smem:[#allocation3]]
    %p99 = scmp.lt.s32.totalorder %s98, 0
    %s100 = scalar_select %p99, %s98, 0
    %s101 = smul.addr %s100, 8
    %s102 = scalar_lea.vmem %s6, %s101
    %s103 = sld [smem:[#allocation4]]
    %p104 = scmp.lt.s32.totalorder %s103, 0
    %s105 = scalar_select %p104, %s103, 0
    %s106 = scalar_lea.vmem %s7, %s105
    %s107 = sld [smem:[#allocation3]]
    %p108 = scmp.lt.s32.totalorder %s107, 0
    %s109 = scalar_select %p108, %s107, 0
    %s110 = smul.addr %s109, 8
    %s111 = scalar_lea.vmem %s8, %s110
    %s112 = sld [smem:[#allocation4]]
    %p113 = scmp.lt.s32.totalorder %s112, 0
    %s114 = scalar_select %p113, %s112, 0
    %s115 = scalar_lea.vmem %s9, %s114
    %s116 = sld [smem:[#allocation3]]
    %p117 = scmp.lt.s32.totalorder %s116, 0
    %s118 = scalar_select %p117, %s116, 0
    %s119 = smul.addr %s118, 8
    %s120 = scalar_lea.vmem %s2, %s119
    %s121 = sld [smem:[#allocation3]]
    %s122 = sld [smem:[#allocation4]]
    %p123 = scmp.lt.s32.totalorder %s122, 0
    %s124 = scalar_select %p123, %s122, 0
    %s125 = smul.addr %s124, 8
    %s126 = scalar_lea.vmem %s3, %s125
    %s127 = sld [smem:[#allocation4]]
    %s128 = sld [smem:[#allocation3]]
    %p129 = scmp.lt.s32.totalorder %s128, 0
    %s130 = scalar_select %p129, %s128, 0
    %s131 = smul.addr %s130, 8
    %s132 = scalar_lea.vmem %s4, %s131
    %s133 = sld [smem:[#allocation3]]
    %s134 = sld [smem:[#allocation4]]
    %p135 = scmp.lt.s32.totalorder %s134, 0
    %s136 = scalar_select %p135, %s134, 0
    %s137 = scalar_lea.vmem %s5, %s136
    %s138 = sld [smem:[#allocation4]]
    %s139 = sld [smem:[#allocation3]]
    %p140 = scmp.lt.s32.totalorder %s139, 0
    %s141 = scalar_select %p140, %s139, 0
    %s142 = smul.addr %s141, 8
    %s143 = scalar_lea.vmem %s6, %s142
    %s144 = sld [smem:[#allocation3]]
    %s145 = sld [smem:[#allocation4]]
    %p146 = scmp.lt.s32.totalorder %s145, 0
    %s147 = scalar_select %p146, %s145, 0
    %s148 = scalar_lea.vmem %s7, %s147
    %s149 = sld [smem:[#allocation4]]
    %s150 = sld [smem:[#allocation3]]
    %p151 = scmp.lt.s32.totalorder %s150, 0
    %s152 = scalar_select %p151, %s150, 0
    %s153 = smul.addr %s152, 8
    %s154 = scalar_lea.vmem %s8, %s153
    %s155 = sld [smem:[#allocation3]]
    %s156 = sld [smem:[#allocation4]]
    %p157 = scmp.lt.s32.totalorder %s156, 0
    %s158 = scalar_select %p157, %s156, 0
    %s159 = scalar_lea.vmem %s9, %s158
    %s160 = sld [smem:[#allocation4]]
    %v161 = vld [vmem:[%s120] sm:$0xff]
    %v162 = vld [vmem:[%s126] sm:$0xff]
    %vm163 = vcmask 261120
    %v165 = vsel %vm163, %v161, 0
    %v168 = vsel %vm163, %v162, 0
    %170 = vmatprep.subr.mxu0 0.0
    %171 = vmatpush1.xpose.msra.mxu0 %v168
    %172 = vmatprep.subr.mxu0 0.0
    %173 = vmatpush1.xpose.msra.mxu0 0.0
    %174 = vmatprep.subr.mxu0 0.0
    %175 = vmatpush1.xpose.msra.mxu0 0.0
    %176 = vmatprep.subr.mxu0 0.0
    %177 = vmatpush1.xpose.msra.mxu0 0.0
    %178 = vmatprep.subr.mxu0 0.0
    %179 = vmatpush1.xpose.msra.mxu0 0.0
    %180 = vmatprep.subr.mxu0 0.0
    %181 = vmatpush1.xpose.msra.mxu0 0.0
    %182 = vmatprep.subr.mxu0 0.0
    %183 = vmatpush1.xpose.msra.mxu0 0.0
    %184 = vmatprep.subr.mxu0 0.0
    %185 = vmatpush1.xpose.msra.mxu0 0.0
    %186 = vmatprep.subr.mxu0 0.0
    %187 = vmatpush1.xpose.msra.mxu0 0.0
    %188 = vmatprep.subr.mxu0 0.0
    %189 = vmatpush1.xpose.msra.mxu0 0.0
    %190 = vmatprep.subr.mxu0 0.0
    %191 = vmatpush1.xpose.msra.mxu0 0.0
    %192 = vmatprep.subr.mxu0 0.0
    %193 = vmatpush1.xpose.msra.mxu0 0.0
    %194 = vmatprep.subr.mxu0 0.0
    %195 = vmatpush1.xpose.msra.mxu0 0.0
    %196 = vmatprep.subr.mxu0 0.0
    %197 = vmatpush1.xpose.msra.mxu0 0.0
    %198 = vmatprep.subr.mxu0 0.0
    %199 = vmatpush1.xpose.msra.mxu0 0.0
    %200 = vmatprep.subr.mxu0 0.0
    %201 = vmatpush1.xpose.msra.mxu0 0.0
    %202 = vmatprep.subr.mxu0 0.0
    %203 = vmatpush1.xpose.msra.mxu0 0.0
    %204 = vmatprep.subr.mxu0 0.0
    %205 = vmatpush1.xpose.msra.mxu0 0.0
    %206 = vmatprep.subr.mxu0 0.0
    %207 = vmatpush1.xpose.msra.mxu0 0.0
    %208 = vmatprep.subr.mxu0 0.0
    %209 = vmatpush1.xpose.msra.mxu0 0.0
    %210 = vmatprep.subr.mxu0 0.0
    %211 = vmatpush1.xpose.msra.mxu0 0.0
    %212 = vmatprep.subr.mxu0 0.0
    %213 = vmatpush1.xpose.msra.mxu0 0.0
    %214 = vmatprep.subr.mxu0 0.0
    %215 = vmatpush1.xpose.msra.mxu0 0.0
    %216 = vmatprep.subr.mxu0 0.0
    %217 = vmatpush1.xpose.msra.mxu0 0.0
    %218 = vmatprep.subr.mxu0 0.0
    %219 = vmatpush1.xpose.msra.mxu0 0.0
    %220 = vmatprep.subr.mxu0 0.0
    %221 = vmatpush1.xpose.msra.mxu0 0.0
    %222 = vmatprep.subr.mxu0 0.0
    %223 = vmatpush1.xpose.msra.mxu0 0.0
    %224 = vmatprep.subr.mxu0 0.0
    %225 = vmatpush1.xpose.msra.mxu0 0.0
    %226 = vmatprep.subr.mxu0 0.0
    %227 = vmatpush1.xpose.msra.mxu0 0.0
    %228 = vmatprep.subr.mxu0 0.0
    %229 = vmatpush1.xpose.msra.mxu0 0.0
    %230 = vmatprep.subr.mxu0 0.0
    %231 = vmatpush1.xpose.msra.mxu0 0.0
    %232 = vmatprep.subr.mxu0 0.0
    %233 = vmatpush1.xpose.msra.mxu0 0.0
    %234 = vmatprep.mubr.f32.mxu0 0.0
    %235 = vmatmul.mubr.f32.gmra.mrb[0].mxu0 %v165
    %v236 = vpop.f32.mrb[0].mxu0
    %v237 = vadd.f32 0.0, %v236
    %v238 = vpop.f32.mrb[0].mxu0
    %239 = vdwg.mxu0
    %v240 = vld [vmem:[%s132] sm:$0xff]
    %v241 = vld [vmem:[%s137] sm:$0x1]
    %243 = vset.pattern.permute.xlu0 0
    %244 = vperm.xlu0 %243, %v240
    %v245 = vpop.permute.xlu0 %244
    %v248 = vlaneseq
    %v249 = vshrl.u32 %v248, 7
    %v250 = vsub.s32 0, %v249
    %v251 = vrot.slane %v241, %v250
    %v253 = vadd.f32 %v245, %v251
    %v254 = vmul.f32 %v237, 2.0
    %v255 = vsub.f32 %v253, %v254
    %v256 = vmax.f32 %v255, 0.0
    %v257 = vld [vmem:[%s154] sm:$0xff]
    %v258 = vld [vmem:[%s159] sm:$0x1]
    %v259 = vlaneseq
    %v260 = vshrl.u32 %v259, 7
    %v261 = vsub.s32 0, %v260
    %v262 = vrot.slane %v258, %v261
    %263 = vset.pattern.permute.xlu0 0
    %264 = vperm.xlu0 %263, %v257
    %v265 = vpop.permute.xlu0 %264
    %vm266 = vcmp.gt.s32.totalorder %v262, %v265
    %vm267 = vcmp.lt.s32.totalorder %v258, 8
    %v268 = vsel %vm267, 1, 0
    %v269 = vlaneseq
    %v270 = vshrl.u32 %v269, 7
    %v271 = vsub.s32 0, %v270
    %v272 = vrot.slane %v268, %v271
    %vm273 = vcmp.eq.s32.totalorder %v272, 1
    %vm274 = vmand %vm266, %vm273
    %v275 = vld [vmem:[%s143] sm:$0xff]
    %v276 = vld [vmem:[%s148] sm:$0x1]
    %277 = vset.pattern.permute.xlu0 0
    %278 = vperm.xlu0 %277, %v275
    %v279 = vpop.permute.xlu0 %278
    %v280 = vlaneseq
    %v281 = vshrl.u32 %v280, 7
    %v282 = vsub.s32 0, %v281
    %v283 = vrot.slane %v276, %v282
    %vm284 = vcmp.eq.s32.totalorder %v279, %v283
    %vm285 = vmand %vm274, %vm284
    %v286 = vmul.f32 %v256, 0.03125
    %vm287 = vcmp.gt.f32.partialorder %v286, 0.08
    %vm288 = vmand %vm285, %vm287
    %vm289 = vcmp.lt.f32.partialorder %v286, 4.0
    %vm290 = vmand %vm285, %vm289
    %v291 = vsub.f32 %v286, 0.08
    %v292 = vsel %vm288, %v291, 0.0
    %v293 = vsub.f32 4.0, %v286
    %v294 = vsel %vm290, %v293, 0.0
    %vm295 = vcmask 64512
    %v296 = vsel %vm295, %v292, 0.0
    %v297 = vrot.slane %v296, 4
    %v298 = vadd.f32 %v296, %v297
    %v299 = vrot.slane %v298, 2
    %v300 = vadd.f32 %v298, %v299
    %v301 = vrot.slane %v300, 1
    %v302 = vadd.f32 %v300, %v301
    %v303 = vsel %vm288, 1, 0
    %v304 = vcvt.s32.f32 %v303
    %v305 = vsel %vm295, %v304, 0.0
    %v306 = vrot.slane %v305, 4
    %v307 = vadd.f32 %v305, %v306
    %v308 = vrot.slane %v307, 2
    %v309 = vadd.f32 %v307, %v308
    %v310 = vrot.slane %v309, 1
    %v311 = vadd.f32 %v309, %v310
    %v312 = vsel %vm295, %v294, 0.0
    %v313 = vrot.slane %v312, 4
    %v314 = vadd.f32 %v312, %v313
    %v315 = vrot.slane %v314, 2
    %v316 = vadd.f32 %v314, %v315
    %v317 = vrot.slane %v316, 1
    %v318 = vadd.f32 %v316, %v317
    %v319 = vsel %vm290, 1, 0
    %v320 = vcvt.s32.f32 %v319
    %v321 = vsel %vm295, %v320, 0.0
    %v322 = vrot.slane %v321, 4
    %v323 = vadd.f32 %v321, %v322
    %v324 = vrot.slane %v323, 2
    %v325 = vadd.f32 %v323, %v324
    %v326 = vrot.slane %v325, 1
    %v327 = vadd.f32 %v325, %v326
    %vm328 = vcmask 1040384
    %v329 = vsel %vm328, %v302, %v311
    %vm330 = vcmask 1041408
    %v331 = vsel %vm330, %v329, %v318
    %vm332 = vcmask 1042432
    %v333 = vsel %vm332, %v331, %v327
    %vm334 = vcmask 1043456
    %v335 = vsel %vm334, %v333, 0.0
    %vm336 = vcmask 1044480
    %v337 = vsel %vm336, %v335, 0.0
    %vm338 = vcmask 1045504
    %v339 = vsel %vm338, %v337, 0.0
    %vm340 = vcmask 1046528
    %v341 = vsel %vm340, %v339, 0.0
    %342 = vst.msk [vmem:[#allocation5] sm:$0xff] %vm295, %v341
    // Predicated region
    $region34: #{tpu_custom_call.1} parent=1 // pred_check
      _
    $region35: #{tpu_custom_call.1} parent=1 // pred_check_branch
      %344 = sbr.rel (0) target = $region37
    $region36: #{tpu_custom_call.1} parent=1 // pred_region
      %s346 = ssub.s32 128, 128
      %347 = vsyncadd [#allocation6], %s346
      %s349 = sshll.u32 [#allocation5], 4
      %s350 = int_to_ptr.vmem [resolvable:$true] %s349
      %352 = dma.vmem_to_hbm [thread:$0]  %s350, 128, %s10, [#allocation6]
    $region37: #{tpu_custom_call.1} parent=1 // pred_fallthru
      _
    // Predicated region
    $region38: #{tpu_custom_call.1} parent=1 // pred_check
      _
    $region39: #{tpu_custom_call.1} parent=1 // pred_check_branch
      %354 = sbr.rel (0) target = $region41
    $region40: #{tpu_custom_call.1} parent=1 // pred_region
      %355 = dma.done [#allocation6], 128
    $region41: #{tpu_custom_call.1} parent=1 // pred_fallthru
      _
    %356 = vsyncpa [#allocation6], 1

</llo_original>
